<compile_context>
chip_gen: v6e
topology: v6e:2x2x1
jax: 0.10.0
libtpu: 0.0.40
codegen_flags: <defaults>
</compile_context>

<pallas_src>
import jax
import jax.numpy as jnp
from jax.experimental import pallas as pl
from jax.experimental.pallas import tpu as pltpu


def _cdiv(a, b):
    return -(-a // b)


def _round_up(x, m):
    return ((x + m - 1) // m) * m


def _sublane(dtype):
    # 8 rows of 32-bit per sublane tile; sub-32-bit dtypes pack along sublanes.
    return max(8, 32 // jnp.dtype(dtype).itemsize)


def _vmem_capacity_bytes():
    # Per-core VMEM: 128 MiB (v5e/v6e), 64 MiB (v7x).  Conservative fallback.
    try:
        cap = int(pltpu.get_tpu_info().vmem_capacity_bytes)
        if cap > 0:
            return cap
    except Exception:  # interpret mode / very old jax
        pass
    return 64 << 20


def _pipeline_mode_supported():
    # Narrow, construction-time probe (no broad except around the real call).
    if not hasattr(pl, "Buffered"):
        return False
    try:
        pl.BlockSpec((8, 128), lambda i: (0, 0), pipeline_mode=pl.Buffered(1))
        return True
    except TypeError:
        return False


_HAS_PIPELINE_MODE = _pipeline_mode_supported()


def _spec(shape, index_map, buffers=None):
    """BlockSpec; grid-invariant blocks request a single buffer (fetched once)."""
    if buffers is not None and _HAS_PIPELINE_MODE:
        return pl.BlockSpec(shape, index_map, pipeline_mode=pl.Buffered(buffers))
    return pl.BlockSpec(shape, index_map)


def _balance_m(M, tile_m):
    """Even-size the token tiles; prefer an even grid_m so the 'parallel' m axis
    splits cleanly across the 2 TensorCores on v7x (no-op on 1-TC chips)."""
    grid_m = _cdiv(M, tile_m)
    if grid_m > 1 and tile_m >= 128:
        if grid_m % 2:
            grid_m += 1
        tile_m = min(tile_m, _round_up(_cdiv(M, grid_m), 128))
        grid_m = _cdiv(M, tile_m)
    return tile_m, grid_m


# ----------------------------- kernels ------------------------------------- #

def _ffn_kernel_resident(x_ref, w1_ref, b1_ref, w2_ref, b2_ref, o_ref):
    # Whole W1/W2 are resident in VMEM: one fused pass per token tile, the
    # result (with b2 folded in) goes straight to o_ref (no scratch, no copy).
    h = jnp.dot(x_ref[...], w1_ref[...], preferred_element_type=jnp.float32)
    h = jnp.maximum(h + b1_ref[...].astype(jnp.float32), 0.0)
    out = jnp.dot(h.astype(w2_ref.dtype), w2_ref[...],
                  preferred_element_type=jnp.float32)
    o_ref[...] = (out + b2_ref[...].astype(jnp.float32)).astype(o_ref.dtype)
    # TODO(synk): the PyTorch module constructs nn.Dropout but never applies it
    # in forward(); if training-mode dropout were ever wired in, build a
    # keep-mask here with pltpu.prng_seed + pltpu.prng_random_bits.


def _ffn_kernel_streamed(x_ref, w1_ref, b1_ref, w2_ref, b2_ref, o_ref, acc_ref):
    k = pl.program_id(1)

    # Fold the output bias into the accumulator init (saves a full-width pass).
    @pl.when(k == 0)
    def _():
        acc_ref[...] = jnp.broadcast_to(
            b2_ref[...].astype(jnp.float32), acc_ref.shape)

    # hidden chunk: relu(x_tile @ W1[:, k-chunk] + b1[k-chunk]) in f32.
    h = jnp.dot(x_ref[...], w1_ref[...], preferred_element_type=jnp.float32)
    h = jnp.maximum(h + b1_ref[...].astype(jnp.float32), 0.0)

    # partial second matmul: acc += h_chunk @ W2[k-chunk, :]
    acc_ref[...] += jnp.dot(h.astype(w2_ref.dtype), w2_ref[...],
                            preferred_element_type=jnp.float32)

    @pl.when(k == pl.num_programs(1) - 1)
    def _():
        o_ref[...] = acc_ref[...].astype(o_ref.dtype)


# ----------------------------- wrapper -------------------------------------- #

def position_wise_ffn(x, w1, b1, w2, b2, *, tile_m=None, tile_k=None,
                      matmul_dtype=None, vmem_budget_bytes=None):
    """x: (B, S, d_model); w1: (d_model, d_ff); w2: (d_ff, d_model).

    matmul_dtype: optionally cast x/W1/W2 (e.g. jnp.bfloat16) before the MXU
      matmuls — v6e/v7x run bf16 at full MXU rate while f32 does not; the
      accumulation stays f32 and the output keeps x's original dtype.  For
      exact f32 semantics leave it None (default).
    vmem_budget_bytes: planning override (testing / tuning hook).
    """
    B, S, D = x.shape
    d_ff = w1.shape[1]
    assert w1.shape == (D, d_ff) and w2.shape == (d_ff, D)
    assert b1.shape == (d_ff,) and b2.shape == (D,)

    out_dtype = x.dtype
    if matmul_dtype is not None:
        x = x.astype(matmul_dtype)
        w1 = w1.astype(matmul_dtype)
        w2 = w2.astype(matmul_dtype)

    M = B * S
    x2d = x.reshape(M, D)
    x_item = jnp.dtype(x.dtype).itemsize
    w_item = jnp.dtype(w1.dtype).itemsize
    sub_m = _sublane(x.dtype)

    cap = _vmem_capacity_bytes()
    budget = (cap - (8 << 20)) if vmem_budget_bytes is None else vmem_budget_bytes
    # Weight blocks are single-buffered when pipeline_mode is available;
    # otherwise the default double buffering doubles their footprint.
    w_mult = 1 if _HAS_PIPELINE_MODE else 2

    # ---------------- weights-resident path ----------------
    weights_bytes = w_mult * (2 * D * d_ff + d_ff + D) * w_item
    # per-token-row VMEM: x + out tiles (double buffered) + f32 hidden (+ temp).
    res_per_row = 4 * D * x_item + 2 * d_ff * 4
    res_avail = budget - weights_bytes
    min_rows = min(_round_up(M, sub_m), 128)
    use_resident = (tile_k is None) and (res_avail >= res_per_row * min_rows)

    if use_resident:
        if tile_m is None:
            target = 512 if x_item >= 4 else 1024
            tm = min(res_avail // res_per_row, target, _round_up(M, sub_m))
            if tm >= 128 and tm < _round_up(M, sub_m):
                tm = (tm // 128) * 128          # tiled: keep 128-row alignment
            else:
                tm = max(sub_m, (tm // sub_m) * sub_m)
            tile_m, grid_m = _balance_m(M, tm)
        else:
            grid_m = _cdiv(M, tile_m)

        M_pad = grid_m * tile_m
        if M_pad != M:
            x2d = jnp.pad(x2d, ((0, M_pad - M), (0, 0)))

        footprint = weights_bytes + tile_m * res_per_row
        vmem_limit = min(max(int(footprint * 1.25) + (8 << 20), 32 << 20), cap)

        out2d = pl.pallas_call(
            _ffn_kernel_resident,
            out_shape=jax.ShapeDtypeStruct((M_pad, D), out_dtype),
            grid_spec=pltpu.PrefetchScalarGridSpec(
                num_scalar_prefetch=0,
                grid=(grid_m,),
                in_specs=[
                    pl.BlockSpec((tile_m, D), lambda i: (i, 0)),     # x tile
                    _spec((D, d_ff), lambda i: (0, 0), buffers=1),   # W1 resident
                    _spec((1, d_ff), lambda i: (0, 0), buffers=1),   # b1 resident
                    _spec((d_ff, D), lambda i: (0, 0), buffers=1),   # W2 resident
                    _spec((1, D), lambda i: (0, 0), buffers=1),      # b2 resident
                ],
                out_specs=pl.BlockSpec((tile_m, D), lambda i: (i, 0)),
            ),
            compiler_params=pltpu.CompilerParams(
                dimension_semantics=("parallel",),
                vmem_limit_bytes=vmem_limit,
            ),
        )(x2d, w1, b1.reshape(1, d_ff), w2, b2.reshape(1, D))

        if M_pad != M:
            out2d = out2d[:M]
        return out2d.reshape(B, S, D)

    # ---------------- weight-streaming path ----------------
    # Pad d_ff so chunks are 128-aligned (zero columns/rows contribute 0).
    Kp = _round_up(d_ff, tile_k if tile_k is not None else 128)
    if Kp != d_ff:
        w1 = jnp.pad(w1, ((0, 0), (0, Kp - d_ff)))
        b1 = jnp.pad(b1, (0, Kp - d_ff))
        w2 = jnp.pad(w2, ((0, Kp - d_ff), (0, 0)))

    def stream_cost(tk):
        # double-buffered W1/W2 chunks + biases   |   x/out dbl buf + f32 acc + f32 hidden(+temp)
        fixed = 2 * 2 * D * tk * w_item + 2 * (tk + D) * w_item
        per_row = 4 * D * x_item + D * 4 + 2 * tk * 4
        return fixed, per_row

    auto_m = tile_m is None
    auto_k = tile_k is None
    if auto_m or auto_k:
        if auto_k:
            step = 256 if Kp % 256 == 0 else 128   # 256-wide MXU on v6e/v7x
            cands = [c for c in range(step, min(Kp, 2048) + 1, step) if Kp % c == 0]
            if not cands:
                cands = [Kp]
        else:
            cands = [tile_k]
        best = None
        for tk in cands:
            fixed, per_row = stream_cost(tk)
            avail = budget - fixed
            if avail < per_row * sub_m:
                continue
            # weight HBM traffic ~ 1/tile_m -> maximize tile_m within budget.
            tm = min(avail // per_row, 2048, _round_up(M, sub_m))
            tm = (tm // 128) * 128 if tm >= 128 else max(sub_m, (tm // sub_m) * sub_m)
            if best is None or (tm, tk) > best:
                best = (tm, tk)
        if best is None:  # budget too tight even for the smallest chunk
            best = (max(sub_m, min(128, _round_up(M, sub_m))), 128 if Kp % 128 == 0 else Kp)
        tm_auto, tk_auto = best
        if auto_k:
            tile_k = tk_auto
        if auto_m:
            tile_m, grid_m = _balance_m(M, tm_auto)
    if not auto_m:
        grid_m = _cdiv(M, tile_m)

    assert Kp % tile_k == 0, (d_ff, Kp, tile_k)
    grid_k = Kp // tile_k

    M_pad = grid_m * tile_m
    if M_pad != M:
        x2d = jnp.pad(x2d, ((0, M_pad - M), (0, 0)))

    fixed, per_row = stream_cost(tile_k)
    footprint = fixed + tile_m * per_row
    vmem_limit = min(max(int(footprint * 1.25) + (8 << 20), 32 << 20), cap)

    out2d = pl.pallas_call(
        _ffn_kernel_streamed,
        out_shape=jax.ShapeDtypeStruct((M_pad, D), out_dtype),
        grid_spec=pltpu.PrefetchScalarGridSpec(
            num_scalar_prefetch=0,
            grid=(grid_m, grid_k),                         # reduction axis last
            in_specs=[
                pl.BlockSpec((tile_m, D), lambda i, k: (i, 0)),    # x tile
                pl.BlockSpec((D, tile_k), lambda i, k: (0, k)),    # W1 chunk
                pl.BlockSpec((1, tile_k), lambda i, k: (0, k)),    # b1 chunk
                pl.BlockSpec((tile_k, D), lambda i, k: (k, 0)),    # W2 chunk
                _spec((1, D), lambda i, k: (0, 0), buffers=1),     # b2 (invariant)
            ],
            out_specs=pl.BlockSpec((tile_m, D), lambda i, k: (i, 0)),
            scratch_shapes=[pltpu.VMEM((tile_m, D), jnp.float32)],
        ),
        compiler_params=pltpu.CompilerParams(
            dimension_semantics=("parallel", "arbitrary"),
            vmem_limit_bytes=vmem_limit,
        ),
    )(x2d, w1, b1.reshape(1, Kp), w2, b2.reshape(1, D))

    if M_pad != M:
        out2d = out2d[:M]
    return out2d.reshape(B, S, D)


# ----------------------------- reference / tests ---------------------------- #

def _ffn_reference(x, w1, b1, w2, b2):
    xf = x.astype(jnp.float32)
    hp = jax.lax.Precision.HIGHEST
    h = jnp.maximum(
        jnp.dot(xf, w1.astype(jnp.float32), precision=hp)
        + b1.astype(jnp.float32), 0.0)
    return (jnp.dot(h, w2.astype(jnp.float32), precision=hp)
            + b2.astype(jnp.float32))


def _make_inputs(key, batch, seq, d_model, d_ff, dtype):
    kx, kw1, kb1, kw2, kb2 = jax.random.split(key, 5)
    x = jax.random.normal(kx, (batch, seq, d_model), jnp.float32)
    w1 = jax.random.normal(kw1, (d_model, d_ff), jnp.float32) * 0.05
    b1 = jax.random.normal(kb1, (d_ff,), jnp.float32) * 0.05
    w2 = jax.random.normal(kw2, (d_ff, d_model), jnp.float32) * 0.05
    b2 = jax.random.normal(kb2, (d_model,), jnp.float32) * 0.05
    return tuple(a.astype(dtype) for a in (x, w1, b1, w2, b2))


if __name__ == "__main__":
    key = jax.random.PRNGKey(0)
    k1, k2, k3 = jax.random.split(key, 3)

    # 1) Small / toy shapes (single grid step, sub-128 lane dims, resident path).
    x, w1, b1, w2, b2 = _make_inputs(k1, 2, 8, 32, 64, jnp.float32)
    out = jax.block_until_ready(position_wise_ffn(x, w1, b1, w2, b2))
    ref = _ffn_reference(x, w1, b1, w2, b2)
    assert out.shape == (2, 8, 32)
    assert jnp.allclose(out, ref, atol=2e-3, rtol=2e-3)

    # 2) Weights-resident path with multiple token tiles (f32).
    x, w1, b1, w2, b2 = _make_inputs(k2, 2, 384, 256, 1024, jnp.float32)
    out = jax.block_until_ready(position_wise_ffn(x, w1, b1, w2, b2))
    ref = _ffn_reference(x, w1, b1, w2, b2)
    assert out.shape == (2, 384, 256)
    assert jnp.allclose(out, ref, atol=2e-3, rtol=2e-3)

    # 3) bf16 operands (f32 accumulation inside the kernel).
    xb, w1b, b1b, w2b, b2b = (a.astype(jnp.bfloat16) for a in (x, w1, b1, w2, b2))
    out_b = jax.block_until_ready(position_wise_ffn(xb, w1b, b1b, w2b, b2b))
    ref_b = _ffn_reference(xb, w1b, b1b, w2b, b2b)
    assert out_b.dtype == jnp.bfloat16
    assert jnp.allclose(out_b.astype(jnp.float32), ref_b, atol=5e-2, rtol=5e-2)

    # 4) Force the weight-streaming path (tiny planning budget) with a d_ff that
    #    is not a multiple of 128 (exercises zero-padding + f32 accumulator).
    xs, w1s, b1s, w2s, b2s = _make_inputs(k3, 2, 256, 256, 1000, jnp.float32)
    out_s = jax.block_until_ready(
        position_wise_ffn(xs, w1s, b1s, w2s, b2s, vmem_budget_bytes=3 << 20))
    ref_s = _ffn_reference(xs, w1s, b1s, w2s, b2s)
    assert out_s.shape == (2, 256, 256)
    assert jnp.allclose(out_s, ref_s, atol=2e-3, rtol=2e-3)

    # 5) f32 inputs with bf16 matmuls (MXU-rate option on v6e/v7x); output dtype
    #    stays f32, accuracy matches the bf16 reference.
    out_m = jax.block_until_ready(
        position_wise_ffn(x, w1, b1, w2, b2, matmul_dtype=jnp.bfloat16))
    ref_m = _ffn_reference(*(a.astype(jnp.bfloat16) for a in (x, w1, b1, w2, b2)))
    assert out_m.dtype == jnp.float32
    assert jnp.allclose(out_m, ref_m, atol=5e-2, rtol=5e-2)

    print("KERNEL_OK")
</pallas_src>

<mosaic_0001>
module attributes {stable_mosaic.version = 11 : i64} {
  func.func @_ffn_kernel_resident(%arg0: i32, %arg1: memref<16x32xf32, #tpu.memory_space<vmem>>, %arg2: memref<32x64xf32, #tpu.memory_space<vmem>>, %arg3: memref<1x64xf32, #tpu.memory_space<vmem>>, %arg4: memref<64x32xf32, #tpu.memory_space<vmem>>, %arg5: memref<1x32xf32, #tpu.memory_space<vmem>>, %arg6: memref<16x32xf32, #tpu.memory_space<vmem>>) attributes {dimension_semantics = [#tpu.dimension_semantics<parallel>], iteration_bounds = array<i64: 1>, scalar_prefetch = 0 : i64, scratch_operands = 0 : i64, tpu.core_type = #tpu.core_type<tc>, window_params = [{transform_indices = @transform_0, window_bounds = array<i64: 16, 32>}, {pipeline_mode = #tpu.pipeline_mode<synchronous>, transform_indices = @transform_1, window_bounds = array<i64: 32, 64>}, {pipeline_mode = #tpu.pipeline_mode<synchronous>, transform_indices = @transform_2, window_bounds = array<i64: 1, 64>}, {pipeline_mode = #tpu.pipeline_mode<synchronous>, transform_indices = @transform_3, window_bounds = array<i64: 64, 32>}, {pipeline_mode = #tpu.pipeline_mode<synchronous>, transform_indices = @transform_4, window_bounds = array<i64: 1, 32>}, {transform_indices = @transform_5, window_bounds = array<i64: 16, 32>}]} {
    %c0 = arith.constant 0 : index
    %c0_0 = arith.constant 0 : index
    %0 = vector.load %arg1[%c0, %c0_0] : memref<16x32xf32, #tpu.memory_space<vmem>>, vector<16x32xf32>
    %c0_1 = arith.constant 0 : index
    %c0_2 = arith.constant 0 : index
    %1 = vector.load %arg2[%c0_1, %c0_2] : memref<32x64xf32, #tpu.memory_space<vmem>>, vector<32x64xf32>
    %cst = arith.constant dense<0.000000e+00> : vector<16x64xf32>
    %2 = tpu.matmul %0, %1, %cst {dimension_numbers = #tpu.dot_dimension_numbers<[1], [0], [0], [1], [0, 0, 1, 1], [], []>} : vector<16x32xf32>, vector<32x64xf32>, vector<16x64xf32> -> vector<16x64xf32>
    %c0_3 = arith.constant 0 : index
    %c0_4 = arith.constant 0 : index
    %3 = vector.load %arg3[%c0_3, %c0_4] : memref<1x64xf32, #tpu.memory_space<vmem>>, vector<1x64xf32>
    %4 = vector.broadcast %3 : vector<1x64xf32> to vector<16x64xf32>
    %5 = arith.addf %2, %4 : vector<16x64xf32>
    %cst_5 = arith.constant 0.000000e+00 : f32
    %6 = vector.broadcast %cst_5 : f32 to vector<16x64xf32>
    %7 = arith.maximumf %5, %6 : vector<16x64xf32>
    %c0_6 = arith.constant 0 : index
    %c0_7 = arith.constant 0 : index
    %8 = vector.load %arg4[%c0_6, %c0_7] : memref<64x32xf32, #tpu.memory_space<vmem>>, vector<64x32xf32>
    %cst_8 = arith.constant dense<0.000000e+00> : vector<16x32xf32>
    %9 = tpu.matmul %7, %8, %cst_8 {dimension_numbers = #tpu.dot_dimension_numbers<[1], [0], [0], [1], [0, 0, 1, 1], [], []>} : vector<16x64xf32>, vector<64x32xf32>, vector<16x32xf32> -> vector<16x32xf32>
    %c0_9 = arith.constant 0 : index
    %c0_10 = arith.constant 0 : index
    %10 = vector.load %arg5[%c0_9, %c0_10] : memref<1x32xf32, #tpu.memory_space<vmem>>, vector<1x32xf32>
    %11 = vector.broadcast %10 : vector<1x32xf32> to vector<16x32xf32>
    %12 = arith.addf %9, %11 : vector<16x32xf32>
    %c0_11 = arith.constant 0 : index
    %c0_12 = arith.constant 0 : index
    %13 = vector.load %arg6[%c0_11, %c0_12] : memref<16x32xf32, #tpu.memory_space<vmem>>, vector<16x32xf32>
    tpu.vector_store %arg6[%c0_11, %c0_12], %12 {strides = array<i32>} : memref<16x32xf32, #tpu.memory_space<vmem>>, vector<16x32xf32>,
    return
  }
  func.func @transform_0(%arg0: i32) -> (i32, i32) {
    %c0_i32 = arith.constant 0 : i32
    %c0_i32_0 = arith.constant 0 : i32
    return %arg0, %c0_i32 : i32, i32
  }
  func.func @transform_1(%arg0: i32) -> (i32, i32) {
    %c0_i32 = arith.constant 0 : i32
    %c0_i32_0 = arith.constant 0 : i32
    %c0_i32_1 = arith.constant 0 : i32
    return %c0_i32, %c0_i32_0 : i32, i32
  }
  func.func @transform_2(%arg0: i32) -> (i32, i32) {
    %c0_i32 = arith.constant 0 : i32
    %c0_i32_0 = arith.constant 0 : i32
    %c0_i32_1 = arith.constant 0 : i32
    return %c0_i32, %c0_i32_0 : i32, i32
  }
  func.func @transform_3(%arg0: i32) -> (i32, i32) {
    %c0_i32 = arith.constant 0 : i32
    %c0_i32_0 = arith.constant 0 : i32
    %c0_i32_1 = arith.constant 0 : i32
    return %c0_i32, %c0_i32_0 : i32, i32
  }
  func.func @transform_4(%arg0: i32) -> (i32, i32) {
    %c0_i32 = arith.constant 0 : i32
    %c0_i32_0 = arith.constant 0 : i32
    %c0_i32_1 = arith.constant 0 : i32
    return %c0_i32, %c0_i32_0 : i32, i32
  }
  func.func @transform_5(%arg0: i32) -> (i32, i32) {
    %c0_i32 = arith.constant 0 : i32
    %c0_i32_0 = arith.constant 0 : i32
    return %arg0, %c0_i32 : i32, i32
  }
}

</mosaic_0001>

<llo_original>
// kernel: tpu_custom_call.1
$region0: #{tpu_custom_call.1}
  #allocation0 [shape = 'u32[]', space=smem, size = 0x4, offset = 0x4, fixed_abs, tag = 'smem constant byte address 0x4 - core index']
  #allocation1 [shape = 'u32[144,128]{1,0:T(1,128)}', space=vmem, size = 0x12000, scoped, tag = 'internal scratch']
  %s0 = inlined_call_operand.vmem [shape: f32[16,32], index: 0, kind: input, shape index: {}]
  %s1 = inlined_call_operand.vmem [shape: f32[32,64], index: 1, kind: input, shape index: {}]
  %s2 = inlined_call_operand.vmem [shape: f32[1,64], index: 2, kind: input, shape index: {}]
  %s3 = inlined_call_operand.vmem [shape: f32[64,32], index: 3, kind: input, shape index: {}]
  %s4 = inlined_call_operand.vmem [shape: f32[1,32], index: 4, kind: input, shape index: {}]
  %s5 = inlined_call_operand.hbm [shape: f32[16,32], index: 5, kind: output, shape index: {}]
  %s6 = sld [smem:[#allocation0]]
  $region30: #{tpu_custom_call.1} parent=0
    _
  %s8 = ssub.s32 1, %s6
  %s9 = scalar_select 0, %s8, %s6
  $region1: #{tpu_custom_call.1} parent=0
    #allocation2 [shape = 'u8[8192]{0}', space=vmem, size = 0x2000, scoped, tag = 'output window, operand 0, single buffered']
    #allocation3 [shape = 's32[1]{0}', space=sflag, size = 0x4, scoped, tag = 'scoped memory for tpu_custom_call.1']
    %10 = vsyncpa [#allocation3], 0
    // Predicated region
    $region2: #{tpu_custom_call.1} parent=1 // pred_check
      _
    $region3: #{tpu_custom_call.1} parent=1 // pred_check_branch
      %12 = sbr.rel (0) target = $region5
    $region4: #{tpu_custom_call.1} parent=1 // pred_region
      _
    $region5: #{tpu_custom_call.1} parent=1 // pred_fallthru
      _
    // Predicated region
    $region6: #{tpu_custom_call.1} parent=1 // pred_check
      _
    $region7: #{tpu_custom_call.1} parent=1 // pred_check_branch
      %14 = sbr.rel (0) target = $region9
    $region8: #{tpu_custom_call.1} parent=1 // pred_region
      _
    $region9: #{tpu_custom_call.1} parent=1 // pred_fallthru
      _
    // Predicated region
    $region10: #{tpu_custom_call.1} parent=1 // pred_check
      _
    $region11: #{tpu_custom_call.1} parent=1 // pred_check_branch
      %16 = sbr.rel (0) target = $region13
    $region12: #{tpu_custom_call.1} parent=1 // pred_region
      _
    $region13: #{tpu_custom_call.1} parent=1 // pred_fallthru
      _
    // Predicated region
    $region14: #{tpu_custom_call.1} parent=1 // pred_check
      _
    $region15: #{tpu_custom_call.1} parent=1 // pred_check_branch
      %18 = sbr.rel (0) target = $region17
    $region16: #{tpu_custom_call.1} parent=1 // pred_region
      _
    $region17: #{tpu_custom_call.1} parent=1 // pred_fallthru
      _
    // Predicated region
    $region18: #{tpu_custom_call.1} parent=1 // pred_check
      _
    $region19: #{tpu_custom_call.1} parent=1 // pred_check_branch
      %20 = sbr.rel (0) target = $region21
    $region20: #{tpu_custom_call.1} parent=1 // pred_region
      _
    $region21: #{tpu_custom_call.1} parent=1 // pred_fallthru
      _
    %v21 = vld [vmem:[%s0] sm:$0xff]
    %v22 = vld [vmem:[%s0 + $0x8] sm:$0xff]
    %v23 = vld [vmem:[%s1] sm:$0xff]
    %v24 = vld [vmem:[%s1 + $0x8] sm:$0xff]
    %v25 = vld [vmem:[%s1 + $0x10] sm:$0xff]
    %v26 = vld [vmem:[%s1 + $0x18] sm:$0xff]
    %v27 = vld [vmem:[%s2] sm:$0x1]
    %v29 = vlaneseq
    %v30 = vshrl.u32 %v29, 7
    %v31 = vsub.s32 0, %v30
    %v32 = vrot.slane %v27, %v31
    %vm34 = vcmask 261120
    %v36 = vsel %vm34, %v21, 0
    %v39 = vsel %vm34, %v22, 0
    %41 = vmatprep.subr.mxu0 0.0
    %42 = vmatpush1.msra.mxu0 0.0
    %43 = vmatprep.subr.mxu0 0.0
    %44 = vmatpush1.msra.mxu0 0.0
    %45 = vmatprep.subr.mxu0 0.0
    %46 = vmatpush1.msra.mxu0 0.0
    %47 = vmatprep.subr.mxu0 0.0
    %48 = vmatpush1.msra.mxu0 0.0
    %49 = vmatprep.subr.mxu0 0.0
    %50 = vmatpush1.msra.mxu0 0.0
    %51 = vmatprep.subr.mxu0 0.0
    %52 = vmatpush1.msra.mxu0 0.0
    %53 = vmatprep.subr.mxu0 0.0
    %54 = vmatpush1.msra.mxu0 0.0
    %55 = vmatprep.subr.mxu0 0.0
    %56 = vmatpush1.msra.mxu0 0.0
    %57 = vmatprep.subr.mxu0 0.0
    %58 = vmatpush1.msra.mxu0 0.0
    %59 = vmatprep.subr.mxu0 0.0
    %60 = vmatpush1.msra.mxu0 0.0
    %61 = vmatprep.subr.mxu0 0.0
    %62 = vmatpush1.msra.mxu0 0.0
    %63 = vmatprep.subr.mxu0 0.0
    %64 = vmatpush1.msra.mxu0 0.0
    %65 = vmatprep.subr.mxu0 0.0
    %66 = vmatpush1.msra.mxu0 %v26
    %67 = vmatprep.subr.mxu0 0.0
    %68 = vmatpush1.msra.mxu0 %v25
    %69 = vmatprep.subr.mxu0 0.0
    %70 = vmatpush1.msra.mxu0 %v24
    %71 = vmatprep.subr.mxu0 0.0
    %72 = vmatpush1.msra.mxu0 %v23
    %73 = vmatprep.subr.mxu0 0.0
    %74 = vmatpush2.msra.mxu0 0.0
    %75 = vmatprep.subr.mxu0 0.0
    %76 = vmatpush2.msra.mxu0 0.0
    %77 = vmatprep.subr.mxu0 0.0
    %78 = vmatpush2.msra.mxu0 0.0
    %79 = vmatprep.subr.mxu0 0.0
    %80 = vmatpush2.msra.mxu0 0.0
    %81 = vmatprep.subr.mxu0 0.0
    %82 = vmatpush2.msra.mxu0 0.0
    %83 = vmatprep.subr.mxu0 0.0
    %84 = vmatpush2.msra.mxu0 0.0
    %85 = vmatprep.subr.mxu0 0.0
    %86 = vmatpush2.msra.mxu0 0.0
    %87 = vmatprep.subr.mxu0 0.0
    %88 = vmatpush2.msra.mxu0 0.0
    %89 = vmatprep.subr.mxu0 0.0
    %90 = vmatpush2.msra.mxu0 0.0
    %91 = vmatprep.subr.mxu0 0.0
    %92 = vmatpush2.msra.mxu0 0.0
    %93 = vmatprep.subr.mxu0 0.0
    %94 = vmatpush2.msra.mxu0 0.0
    %95 = vmatprep.subr.mxu0 0.0
    %96 = vmatpush2.msra.mxu0 0.0
    %97 = vmatprep.subr.mxu0 0.0
    %98 = vmatpush2.msra.mxu0 0.0
    %99 = vmatprep.subr.mxu0 0.0
    %100 = vmatpush2.msra.mxu0 0.0
    %101 = vmatprep.subr.mxu0 0.0
    %102 = vmatpush2.msra.mxu0 0.0
    %103 = vmatprep.subr.mxu0 0.0
    %104 = vmatpush2.msra.mxu0 0.0
    %105 = vmatprep.mubr.f32.mxu0 0.0
    %106 = vmatmul.mubr.f32.gmra.mxu0 %v36
    %v107 = vpop.f32.mrf.mxu0
    %v108 = vadd.f32 %v32, %v107
    %v109 = vpop.f32.mrf.mxu0
    %110 = vmatprep.mubr.f32.mxu0 0.0
    %111 = vmatmul.mubr.f32.gmra.mxu0 %v39
    %v112 = vpop.f32.mrf.mxu0
    %v113 = vadd.f32 %v32, %v112
    %v114 = vpop.f32.mrf.mxu0
    %115 = vdwg.mxu0
    %v116 = vmax.f32 %v108, 0.0
    %v117 = vmax.f32 %v113, 0.0
    %v118 = vld [vmem:[%s3] sm:$0xff]
    %v119 = vld [vmem:[%s3 + $0x8] sm:$0xff]
    %v120 = vld [vmem:[%s3 + $0x10] sm:$0xff]
    %v121 = vld [vmem:[%s3 + $0x18] sm:$0xff]
    %v122 = vld [vmem:[%s3 + $0x20] sm:$0xff]
    %v123 = vld [vmem:[%s3 + $0x28] sm:$0xff]
    %v124 = vld [vmem:[%s3 + $0x30] sm:$0xff]
    %v125 = vld [vmem:[%s3 + $0x38] sm:$0xff]
    %v126 = vld [vmem:[%s4] sm:$0x1]
    %v128 = vlaneseq
    %v129 = vshrl.u32 %v128, 7
    %v130 = vsub.s32 0, %v129
    %v131 = vrot.slane %v126, %v130
    %vm133 = vcmask 523264
    %v135 = vsel %vm133, %v116, 0
    %v138 = vsel %vm133, %v117, 0
    %140 = vmatprep.subr.mxu0 0.0
    %141 = vmatpush1.msra.mxu0 0.0
    %142 = vmatprep.subr.mxu0 0.0
    %143 = vmatpush1.msra.mxu0 0.0
    %144 = vmatprep.subr.mxu0 0.0
    %145 = vmatpush1.msra.mxu0 0.0
    %146 = vmatprep.subr.mxu0 0.0
    %147 = vmatpush1.msra.mxu0 0.0
    %148 = vmatprep.subr.mxu0 0.0
    %149 = vmatpush1.msra.mxu0 0.0
    %150 = vmatprep.subr.mxu0 0.0
    %151 = vmatpush1.msra.mxu0 0.0
    %152 = vmatprep.subr.mxu0 0.0
    %153 = vmatpush1.msra.mxu0 0.0
    %154 = vmatprep.subr.mxu0 0.0
    %155 = vmatpush1.msra.mxu0 0.0
    %156 = vmatprep.subr.mxu0 0.0
    %157 = vmatpush1.msra.mxu0 %v125
    %158 = vmatprep.subr.mxu0 0.0
    %159 = vmatpush1.msra.mxu0 %v124
    %160 = vmatprep.subr.mxu0 0.0
    %161 = vmatpush1.msra.mxu0 %v123
    %162 = vmatprep.subr.mxu0 0.0
    %163 = vmatpush1.msra.mxu0 %v122
    %164 = vmatprep.subr.mxu0 0.0
    %165 = vmatpush1.msra.mxu0 %v121
    %166 = vmatprep.subr.mxu0 0.0
    %167 = vmatpush1.msra.mxu0 %v120
    %168 = vmatprep.subr.mxu0 0.0
    %169 = vmatpush1.msra.mxu0 %v119
    %170 = vmatprep.subr.mxu0 0.0
    %171 = vmatpush1.msra.mxu0 %v118
    %172 = vmatprep.subr.mxu0 0.0
    %173 = vmatpush2.msra.mxu0 0.0
    %174 = vmatprep.subr.mxu0 0.0
    %175 = vmatpush2.msra.mxu0 0.0
    %176 = vmatprep.subr.mxu0 0.0
    %177 = vmatpush2.msra.mxu0 0.0
    %178 = vmatprep.subr.mxu0 0.0
    %179 = vmatpush2.msra.mxu0 0.0
    %180 = vmatprep.subr.mxu0 0.0
    %181 = vmatpush2.msra.mxu0 0.0
    %182 = vmatprep.subr.mxu0 0.0
    %183 = vmatpush2.msra.mxu0 0.0
    %184 = vmatprep.subr.mxu0 0.0
    %185 = vmatpush2.msra.mxu0 0.0
    %186 = vmatprep.subr.mxu0 0.0
    %187 = vmatpush2.msra.mxu0 0.0
    %188 = vmatprep.subr.mxu0 0.0
    %189 = vmatpush2.msra.mxu0 0.0
    %190 = vmatprep.subr.mxu0 0.0
    %191 = vmatpush2.msra.mxu0 0.0
    %192 = vmatprep.subr.mxu0 0.0
    %193 = vmatpush2.msra.mxu0 0.0
    %194 = vmatprep.subr.mxu0 0.0
    %195 = vmatpush2.msra.mxu0 0.0
    %196 = vmatprep.subr.mxu0 0.0
    %197 = vmatpush2.msra.mxu0 0.0
    %198 = vmatprep.subr.mxu0 0.0
    %199 = vmatpush2.msra.mxu0 0.0
    %200 = vmatprep.subr.mxu0 0.0
    %201 = vmatpush2.msra.mxu0 0.0
    %202 = vmatprep.subr.mxu0 0.0
    %203 = vmatpush2.msra.mxu0 0.0
    %204 = vmatprep.mubr.f32.mxu0 0.0
    %205 = vmatmul.mubr.f32.gmra.mxu0 %v135
    %v206 = vpop.f32.mrf.mxu0
    %v207 = vadd.f32 %v131, %v206
    %v208 = vpop.f32.mrf.mxu0
    %209 = vmatprep.mubr.f32.mxu0 0.0
    %210 = vmatmul.mubr.f32.gmra.mxu0 %v138
    %v211 = vpop.f32.mrf.mxu0
    %v212 = vadd.f32 %v131, %v211
    %v213 = vpop.f32.mrf.mxu0
    %214 = vdwg.mxu0
    %215 = vst.msk [vmem:[#allocation2] sm:$0xff] %vm34, %v207
    %216 = vst.msk [vmem:[#allocation2 + $0x8] sm:$0xff] %vm34, %v212
    // Predicated region
    $region22: #{tpu_custom_call.1} parent=1 // pred_check
      _
    $region23: #{tpu_custom_call.1} parent=1 // pred_check_branch
      %218 = sbr.rel (0) target = $region25
    $region24: #{tpu_custom_call.1} parent=1 // pred_region
      %s220 = ssub.s32 256, 256
      %221 = vsyncadd [#allocation3], %s220
      %s222 = sshll.u32 [#allocation2], 4
      %s223 = int_to_ptr.vmem [resolvable:$true] %s222
      %228 = dma.vmem_to_hbm [thread:$0]  %s223, 256, %s5, [#allocation3], 128, 128, 8
    $region25: #{tpu_custom_call.1} parent=1 // pred_fallthru
      _
    // Predicated region
    $region26: #{tpu_custom_call.1} parent=1 // pred_check
      _
    $region27: #{tpu_custom_call.1} parent=1 // pred_check_branch
      %230 = sbr.rel (0) target = $region29
    $region28: #{tpu_custom_call.1} parent=1 // pred_region
      %231 = dma.done [#allocation3], 256
    $region29: #{tpu_custom_call.1} parent=1 // pred_fallthru
      _
    %232 = vsyncpa [#allocation3], 1

</llo_original>
